<compile_context>
chip_gen: v6e
topology: v6e:2x2x1
jax: 0.10.0
libtpu: 0.0.40
codegen_flags: <defaults>
</compile_context>

<pallas_src>
import functools

import jax
import jax.numpy as jnp
from jax.experimental import pallas as pl
from jax.experimental.pallas import tpu as pltpu

# Deterministic drift constants of the market-simulator stand-in.
MU_DRIFT = 1.01
SIGMA_DRIFT = 1.005
ZETA_DRIFT = 0.99

# Flattened (B*T) tiling: 8 sublanes x 512 lanes per grid step.
_SUB = 8
_LANE = 512
_BLOCK_ELEMS = _SUB * _LANE


# ----------------------------- Pallas kernel ------------------------------- #
def _action_kernel(mu0_ref, sig0_ref, zeta0_ref,
                   mu_sc_ref, sig_sc_ref, zeta_sc_ref, out_ref, *,
                   num_stock, num_brownian, gamma):
    """Per-(b,t) analytic action.  All tiles are (8, 512) f32; N/M unrolled."""
    N, M = num_stock, num_brownian

    mu_sc = mu_sc_ref[...]        # (8, LANE) drift scale for mu
    sig_sc = sig_sc_ref[...]      # (8, LANE) drift scale for sigma
    zeta_sc = zeta_sc_ref[...]    # (8, LANE) drift scale for zeta

    # Reconstruct per-(b, t) parameters from initial values (SMEM scalars)
    # and the per-element drift scales.  Each entry below is a full VMEM tile.
    sig = [[sig0_ref[i * M + m] * sig_sc for m in range(M)] for i in range(N)]
    zet = [zeta0_ref[m] * zeta_sc for m in range(M)]

    # Gram matrix S = sigma @ sigma^T (symmetric, SPD for full-rank sigma) and
    # fused right-hand side rhs = mu / gamma - sigma @ zeta  (single solve).
    inv_gamma = 1.0 / gamma
    S = [[None] * N for _ in range(N)]
    rhs = []
    for i in range(N):
        for j in range(i, N):
            acc = sig[i][0] * sig[j][0]
            for m in range(1, M):
                acc = acc + sig[i][m] * sig[j][m]
            S[i][j] = acc
            S[j][i] = acc
        sz = sig[i][0] * zet[0]
        for m in range(1, M):
            sz = sz + sig[i][m] * zet[m]
        rhs.append((mu0_ref[i] * inv_gamma) * mu_sc - sz)

    def recip(x):
        # EUP approximate reciprocal (own VLIW slot) + one Newton step for
        # full f32 accuracy at the cost of 2 mults + 1 sub on the VPU.
        r = pl.reciprocal(x, approx=True)
        return r * (2.0 - x * r)

    if N == 1:
        out_ref[0, :, :] = rhs[0] * recip(S[0][0])
    elif N == 2:
        # Closed-form 2x2 adjugate solve (S is symmetric).
        inv_det = recip(S[0][0] * S[1][1] - S[0][1] * S[1][0])
        out_ref[0, :, :] = (S[1][1] * rhs[0] - S[0][1] * rhs[1]) * inv_det
        out_ref[1, :, :] = (S[0][0] * rhs[1] - S[1][0] * rhs[0]) * inv_det
    else:
        # General tiny-N path: unrolled Gauss-Jordan solve of S x = rhs.
        # Precondition (as in the PyTorch reference): S is SPD (M >= N,
        # sigma full rank), so no pivoting is required.
        A = [list(row) for row in S]
        x = list(rhs)
        for k in range(N):
            p = recip(A[k][k])
            A[k] = [a * p for a in A[k]]
            x[k] = x[k] * p
            for i in range(N):
                if i == k:
                    continue
                f = A[i][k]
                A[i] = [A[i][j] - f * A[k][j] for j in range(N)]
                x[i] = x[i] - f * x[k]
        for i in range(N):
            out_ref[i, :, :] = x[i]


def pallas_actions(mu0, sigma0, zeta0, mu_pow, sig_pow, zeta_pow, *,
                   batch, T, gamma):
    """Compute actions (B, T, N) from initial params + per-step drift powers.

    mu0 (N,1), sigma0 (N,M), zeta0 (M,1); *_pow are (T,) drift powers.
    """
    N, M = sigma0.shape
    B = batch
    BT = B * T
    n_blocks = -(-BT // _BLOCK_ELEMS)          # ceil
    BT_pad = n_blocks * _BLOCK_ELEMS
    R = BT_pad // _LANE                        # rows, multiple of 8

    def pack(pow_vec):
        # flat index = b*T + t  ->  pattern repeats per batch element.
        flat = jnp.broadcast_to(pow_vec[None, :], (B, T)).reshape(-1)
        flat = jnp.pad(flat, (0, BT_pad - BT), constant_values=1.0)
        return flat.reshape(R, _LANE).astype(jnp.float32)

    mu_sc = pack(mu_pow)
    sig_sc = pack(sig_pow)
    zeta_sc = pack(zeta_pow)

    mu0_f = mu0.reshape(-1).astype(jnp.float32)       # (N,)
    sig0_f = sigma0.reshape(-1).astype(jnp.float32)   # (N*M,) row-major
    zeta0_f = zeta0.reshape(-1).astype(jnp.float32)   # (M,)

    kernel = functools.partial(_action_kernel, num_stock=N, num_brownian=M,
                               gamma=float(gamma))

    flops = int((2 * N * N * M + 4 * N * M + 8 * N + 12) * BT_pad)
    bytes_accessed = int((3 + N) * 4 * BT_pad + 4 * (2 * N + N * M + M))

    acts = pl.pallas_call(
        kernel,
        out_shape=jax.ShapeDtypeStruct((N, R, _LANE), jnp.float32),
        grid=(n_blocks,),
        in_specs=[
            pl.BlockSpec(memory_space=pltpu.MemorySpace.SMEM),   # mu0
            pl.BlockSpec(memory_space=pltpu.MemorySpace.SMEM),   # sigma0
            pl.BlockSpec(memory_space=pltpu.MemorySpace.SMEM),   # zeta0
            pl.BlockSpec((_SUB, _LANE), lambda g: (g, 0)),       # mu scale
            pl.BlockSpec((_SUB, _LANE), lambda g: (g, 0)),       # sigma scale
            pl.BlockSpec((_SUB, _LANE), lambda g: (g, 0)),       # zeta scale
        ],
        out_specs=pl.BlockSpec((N, _SUB, _LANE), lambda g: (0, g, 0)),
        compiler_params=pltpu.CompilerParams(
            dimension_semantics=("parallel",)),    # lets v7x use both TCs
        cost_estimate=pl.CostEstimate(flops=flops, transcendentals=BT_pad,
                                      bytes_accessed=bytes_accessed),
    )(mu0_f, sig0_f, zeta0_f, mu_sc, sig_sc, zeta_sc)

    acts = acts.reshape(N, BT_pad)[:, :BT].reshape(N, B, T)
    return jnp.transpose(acts, (1, 2, 0))            # (B, T, N)


# ------------------------- forward (module emulation) ---------------------- #
def ana_sol_max_wealth_forward(x, system_param, *, num_stock, num_brownian,
                               time_step, dt, gamma):
    """Mirrors AnaSolMaxWealth.forward.  Returns (actions (B,T,N), params)."""
    B = x.shape[0]
    N, M = num_stock, num_brownian
    T = int(time_step / dt)

    mu0, sigma0 = system_param['geo_param']     # (N,1), (N,M)
    zeta0 = system_param['zeta']                # (M,1)
    bt0 = system_param['bt']                    # (1,)

    t = jnp.arange(T, dtype=jnp.float32)
    mu_pow = MU_DRIFT ** t
    sig_pow = SIGMA_DRIFT ** t
    zeta_pow = ZETA_DRIFT ** t

    actions = pallas_actions(mu0, sigma0, zeta0, mu_pow, sig_pow, zeta_pow,
                             batch=B, T=T, gamma=gamma)

    params = {
        'mu': jnp.broadcast_to(mu0[None, :, 0, None] * mu_pow[None, None, :],
                               (B, N, T)),
        'sigma': jnp.broadcast_to(sigma0[None, None]
                                  * sig_pow[None, :, None, None],
                                  (B, T, N, M)),
        'zeta': jnp.broadcast_to(zeta0[None, None, :, 0]
                                 * zeta_pow[None, :, None],
                                 (B, T, M)),
        'bt': (bt0[None, :] + dt * t[:, None]).astype(jnp.float32),   # (T, 1)
    }
    params['lamda'] = jnp.zeros_like(params['bt'])                    # (T, 1)
    return actions, params


def _reference_actions(x, system_param, *, T, gamma):
    """Pure-JAX reference (jnp.linalg.inv), mirrors the torch math exactly."""
    B = x.shape[0]
    mu0, sigma0 = system_param['geo_param']
    zeta0 = system_param['zeta']
    t = jnp.arange(T, dtype=jnp.float32)
    mu_t = jnp.broadcast_to(mu0[None, None] * (MU_DRIFT ** t)[None, :, None, None],
                            (B, T) + mu0.shape)
    sig_t = jnp.broadcast_to(sigma0[None, None] * (SIGMA_DRIFT ** t)[None, :, None, None],
                             (B, T) + sigma0.shape)
    zeta_t = jnp.broadcast_to(zeta0[None, None] * (ZETA_DRIFT ** t)[None, :, None, None],
                              (B, T) + zeta0.shape)
    S = sig_t @ jnp.swapaxes(sig_t, -1, -2)
    Sinv = jnp.linalg.inv(S)
    act = (1.0 / gamma) * (Sinv @ mu_t) - Sinv @ (sig_t @ zeta_t)     # (B,T,N,1)
    return act[..., 0]                                                # (B,T,N)


# ---------------------------------- main ----------------------------------- #
if __name__ == "__main__":
    B, N, M = 8, 2, 2                 # batch, num_stock, num_brownian
    time_step, dt = 4, 0.25           # -> T = 16 (kept small for the demo)
    gamma = 0.1
    T = int(time_step / dt)

    key = jax.random.PRNGKey(0)
    k1, k2, k3, k4 = jax.random.split(key, 4)
    x = jax.random.normal(k1, (B, 1 + N), dtype=jnp.float32)
    mu0 = 0.05 + 0.01 * jax.random.normal(k2, (N, 1), dtype=jnp.float32)
    sigma0 = (0.2 * jnp.eye(N, M, dtype=jnp.float32)
              + 0.05 * jax.random.normal(k3, (N, M), dtype=jnp.float32))
    zeta0 = 0.1 * jax.random.normal(k4, (M, 1), dtype=jnp.float32)
    bt0 = jnp.array([0.01], dtype=jnp.float32)
    system_param = {'geo_param': (mu0, sigma0), 'zeta': zeta0, 'bt': bt0}

    actions, params = ana_sol_max_wealth_forward(
        x, system_param, num_stock=N, num_brownian=M,
        time_step=time_step, dt=dt, gamma=gamma)
    actions = jax.block_until_ready(actions)

    # sanity: shapes match the PyTorch module's documented outputs
    assert actions.shape == (B, T, N)
    assert params['mu'].shape == (B, N, T)
    assert params['sigma'].shape == (B, T, N, M)
    assert params['zeta'].shape == (B, T, M)
    assert params['bt'].shape == (T, 1)
    assert params['lamda'].shape == (T, 1)

    ref = jax.block_until_ready(_reference_actions(
        x, system_param, T=T, gamma=gamma))
    assert jnp.allclose(actions, ref, rtol=1e-4, atol=1e-4), (
        f"max err {jnp.max(jnp.abs(actions - ref))}")

    print("KERNEL_OK")
</pallas_src>

<mosaic_0001>
module attributes {stable_mosaic.version = 11 : i64} {
  func.func @_action_kernel(%arg0: i32, %arg1: memref<2xf32, #tpu.memory_space<smem>>, %arg2: memref<4xf32, #tpu.memory_space<smem>>, %arg3: memref<2xf32, #tpu.memory_space<smem>>, %arg4: memref<8x512xf32, #tpu.memory_space<vmem>>, %arg5: memref<8x512xf32, #tpu.memory_space<vmem>>, %arg6: memref<8x512xf32, #tpu.memory_space<vmem>>, %arg7: memref<2x8x512xf32, #tpu.memory_space<vmem>>) attributes {dimension_semantics = [#tpu.dimension_semantics<parallel>], iteration_bounds = array<i64: 1>, scalar_prefetch = 0 : i64, scratch_operands = 0 : i64, tpu.core_type = #tpu.core_type<tc>, window_params = [{transform_indices = @transform_0, window_bounds = array<i64: 2>}, {transform_indices = @transform_1, window_bounds = array<i64: 4>}, {transform_indices = @transform_2, window_bounds = array<i64: 2>}, {transform_indices = @transform_3, window_bounds = array<i64: 8, 512>}, {transform_indices = @transform_4, window_bounds = array<i64: 8, 512>}, {transform_indices = @transform_5, window_bounds = array<i64: 8, 512>}, {transform_indices = @transform_6, window_bounds = array<i64: 2, 8, 512>}]} {
    %c0 = arith.constant 0 : index
    %c0_0 = arith.constant 0 : index
    %0 = vector.load %arg4[%c0, %c0_0] : memref<8x512xf32, #tpu.memory_space<vmem>>, vector<8x512xf32>
    %c0_1 = arith.constant 0 : index
    %c0_2 = arith.constant 0 : index
    %1 = vector.load %arg5[%c0_1, %c0_2] : memref<8x512xf32, #tpu.memory_space<vmem>>, vector<8x512xf32>
    %c0_3 = arith.constant 0 : index
    %c0_4 = arith.constant 0 : index
    %2 = vector.load %arg6[%c0_3, %c0_4] : memref<8x512xf32, #tpu.memory_space<vmem>>, vector<8x512xf32>
    %c0_5 = arith.constant 0 : index
    %3 = memref.load %arg2[%c0_5] : memref<4xf32, #tpu.memory_space<smem>>
    %4 = vector.broadcast %3 : f32 to vector<8x512xf32>
    %5 = arith.mulf %4, %1 : vector<8x512xf32>
    %c1 = arith.constant 1 : index
    %6 = memref.load %arg2[%c1] : memref<4xf32, #tpu.memory_space<smem>>
    %7 = vector.broadcast %6 : f32 to vector<8x512xf32>
    %8 = arith.mulf %7, %1 : vector<8x512xf32>
    %c2 = arith.constant 2 : index
    %9 = memref.load %arg2[%c2] : memref<4xf32, #tpu.memory_space<smem>>
    %10 = vector.broadcast %9 : f32 to vector<8x512xf32>
    %11 = arith.mulf %10, %1 : vector<8x512xf32>
    %c3 = arith.constant 3 : index
    %12 = memref.load %arg2[%c3] : memref<4xf32, #tpu.memory_space<smem>>
    %13 = vector.broadcast %12 : f32 to vector<8x512xf32>
    %14 = arith.mulf %13, %1 : vector<8x512xf32>
    %c0_6 = arith.constant 0 : index
    %15 = memref.load %arg3[%c0_6] : memref<2xf32, #tpu.memory_space<smem>>
    %16 = vector.broadcast %15 : f32 to vector<8x512xf32>
    %17 = arith.mulf %16, %2 : vector<8x512xf32>
    %c1_7 = arith.constant 1 : index
    %18 = memref.load %arg3[%c1_7] : memref<2xf32, #tpu.memory_space<smem>>
    %19 = vector.broadcast %18 : f32 to vector<8x512xf32>
    %20 = arith.mulf %19, %2 : vector<8x512xf32>
    %21 = arith.mulf %5, %5 : vector<8x512xf32>
    %22 = arith.mulf %8, %8 : vector<8x512xf32>
    %23 = arith.addf %21, %22 : vector<8x512xf32>
    %24 = arith.mulf %5, %11 : vector<8x512xf32>
    %25 = arith.mulf %8, %14 : vector<8x512xf32>
    %26 = arith.addf %24, %25 : vector<8x512xf32>
    %27 = arith.mulf %5, %17 : vector<8x512xf32>
    %28 = arith.mulf %8, %20 : vector<8x512xf32>
    %29 = arith.addf %27, %28 : vector<8x512xf32>
    %c0_8 = arith.constant 0 : index
    %30 = memref.load %arg1[%c0_8] : memref<2xf32, #tpu.memory_space<smem>>
    %cst = arith.constant 1.000000e+01 : f32
    %31 = arith.mulf %30, %cst : f32
    %32 = vector.broadcast %31 : f32 to vector<8x512xf32>
    %33 = arith.mulf %32, %0 : vector<8x512xf32>
    %34 = arith.subf %33, %29 : vector<8x512xf32>
    %35 = arith.mulf %11, %11 : vector<8x512xf32>
    %36 = arith.mulf %14, %14 : vector<8x512xf32>
    %37 = arith.addf %35, %36 : vector<8x512xf32>
    %38 = arith.mulf %11, %17 : vector<8x512xf32>
    %39 = arith.mulf %14, %20 : vector<8x512xf32>
    %40 = arith.addf %38, %39 : vector<8x512xf32>
    %c1_9 = arith.constant 1 : index
    %41 = memref.load %arg1[%c1_9] : memref<2xf32, #tpu.memory_space<smem>>
    %cst_10 = arith.constant 1.000000e+01 : f32
    %42 = arith.mulf %41, %cst_10 : f32
    %43 = vector.broadcast %42 : f32 to vector<8x512xf32>
    %44 = arith.mulf %43, %0 : vector<8x512xf32>
    %45 = arith.subf %44, %40 : vector<8x512xf32>
    %46 = arith.mulf %23, %37 : vector<8x512xf32>
    %47 = arith.mulf %26, %26 : vector<8x512xf32>
    %48 = arith.subf %46, %47 : vector<8x512xf32>
    %49 = tpu.reciprocal %48 {approx = true} : vector<8x512xf32> -> vector<8x512xf32>
    %50 = arith.mulf %48, %49 : vector<8x512xf32>
    %cst_11 = arith.constant 2.000000e+00 : f32
    %51 = vector.broadcast %cst_11 : f32 to vector<8x512xf32>
    %52 = arith.subf %51, %50 : vector<8x512xf32>
    %53 = arith.mulf %49, %52 : vector<8x512xf32>
    %54 = arith.mulf %37, %34 : vector<8x512xf32>
    %55 = arith.mulf %26, %45 : vector<8x512xf32>
    %56 = arith.subf %54, %55 : vector<8x512xf32>
    %57 = arith.mulf %56, %53 : vector<8x512xf32>
    %c0_12 = arith.constant 0 : index
    %c0_13 = arith.constant 0 : index
    %c0_14 = arith.constant 0 : index
    %58 = vector.load %arg7[%c0_12, %c0_13, %c0_14] : memref<2x8x512xf32, #tpu.memory_space<vmem>>, vector<1x8x512xf32>
    %59 = vector.shape_cast %58 : vector<1x8x512xf32> to vector<8x512xf32>
    %60 = vector.shape_cast %57 : vector<8x512xf32> to vector<1x8x512xf32>
    tpu.vector_store %arg7[%c0_12, %c0_13, %c0_14], %60 {strides = array<i32>} : memref<2x8x512xf32, #tpu.memory_space<vmem>>, vector<1x8x512xf32>,
    %61 = arith.mulf %23, %45 : vector<8x512xf32>
    %62 = arith.mulf %26, %34 : vector<8x512xf32>
    %63 = arith.subf %61, %62 : vector<8x512xf32>
    %64 = arith.mulf %63, %53 : vector<8x512xf32>
    %c1_15 = arith.constant 1 : index
    %c0_16 = arith.constant 0 : index
    %c0_17 = arith.constant 0 : index
    %65 = vector.load %arg7[%c1_15, %c0_16, %c0_17] : memref<2x8x512xf32, #tpu.memory_space<vmem>>, vector<1x8x512xf32>
    %66 = vector.shape_cast %65 : vector<1x8x512xf32> to vector<8x512xf32>
    %67 = vector.shape_cast %64 : vector<8x512xf32> to vector<1x8x512xf32>
    tpu.vector_store %arg7[%c1_15, %c0_16, %c0_17], %67 {strides = array<i32>} : memref<2x8x512xf32, #tpu.memory_space<vmem>>, vector<1x8x512xf32>,
    return
  }
  func.func @transform_0(%arg0: i32) -> i32 {
    %c0_i32 = arith.constant 0 : i32
    %c0_i32_0 = arith.constant 0 : i32
    return %c0_i32 : i32
  }
  func.func @transform_1(%arg0: i32) -> i32 {
    %c0_i32 = arith.constant 0 : i32
    %c0_i32_0 = arith.constant 0 : i32
    return %c0_i32 : i32
  }
  func.func @transform_2(%arg0: i32) -> i32 {
    %c0_i32 = arith.constant 0 : i32
    %c0_i32_0 = arith.constant 0 : i32
    return %c0_i32 : i32
  }
  func.func @transform_3(%arg0: i32) -> (i32, i32) {
    %c0_i32 = arith.constant 0 : i32
    %c0_i32_0 = arith.constant 0 : i32
    return %arg0, %c0_i32 : i32, i32
  }
  func.func @transform_4(%arg0: i32) -> (i32, i32) {
    %c0_i32 = arith.constant 0 : i32
    %c0_i32_0 = arith.constant 0 : i32
    return %arg0, %c0_i32 : i32, i32
  }
  func.func @transform_5(%arg0: i32) -> (i32, i32) {
    %c0_i32 = arith.constant 0 : i32
    %c0_i32_0 = arith.constant 0 : i32
    return %arg0, %c0_i32 : i32, i32
  }
  func.func @transform_6(%arg0: i32) -> (i32, i32, i32) {
    %c0_i32 = arith.constant 0 : i32
    %c0_i32_0 = arith.constant 0 : i32
    %c0_i32_1 = arith.constant 0 : i32
    return %c0_i32, %arg0, %c0_i32_0 : i32, i32, i32
  }
}

</mosaic_0001>

<llo_original>
// kernel: tpu_custom_call.1
$region0: #{tpu_custom_call.1}
  #allocation0 [shape = 'u32[]', space=smem, size = 0x4, offset = 0x4, fixed_abs, tag = 'smem constant byte address 0x4 - core index']
  #allocation1 [shape = 'u32[144,128]{1,0:T(1,128)}', space=vmem, size = 0x12000, scoped, tag = 'internal scratch']
  %s0 = inlined_call_operand.hbm [shape: f32[2], index: 0, kind: input, shape index: {}]
  %s1 = inlined_call_operand.vmem [shape: f32[4], index: 1, kind: input, shape index: {}]
  %s2 = inlined_call_operand.vmem [shape: f32[2], index: 2, kind: input, shape index: {}]
  %s3 = inlined_call_operand.hbm [shape: f32[8,512], index: 3, kind: input, shape index: {}]
  %s4 = inlined_call_operand.hbm [shape: f32[8,512], index: 4, kind: input, shape index: {}]
  %s5 = inlined_call_operand.hbm [shape: f32[8,512], index: 5, kind: input, shape index: {}]
  %s6 = inlined_call_operand.hbm [shape: f32[2,8,512], index: 6, kind: output, shape index: {}]
  %s7 = sld [smem:[#allocation0]]
  $region58: #{tpu_custom_call.1} parent=0
    _
  %s9 = ssub.s32 1, %s7
  %s10 = scalar_select 0, %s9, %s7
  $region1: #{tpu_custom_call.1} parent=0
    #allocation2 [shape = 'u8[512]{0}', space=smem, size = 0x200, scoped, tag = 'input window, operand 0, single buffered']
    #allocation3 [shape = 's32[1]{0}', space=sflag, size = 0x4, scoped, tag = 'scoped memory for tpu_custom_call.1']
    #allocation4 [shape = 's32[1]{0}', space=sflag, size = 0x4, scoped, tag = 'scoped memory for tpu_custom_call.1']
    #allocation5 [shape = 's32[1]{0}', space=sflag, size = 0x4, scoped, tag = 'scoped memory for tpu_custom_call.1']
    #allocation6 [shape = 's32[1]{0}', space=sflag, size = 0x4, scoped, tag = 'scoped memory for tpu_custom_call.1']
    #allocation7 [shape = 'u8[512]{0}', space=smem, size = 0x200, scoped, tag = 'input window, operand 1, single buffered']
    #allocation8 [shape = 'u8[512]{0}', space=smem, size = 0x200, scoped, tag = 'input window, operand 2, single buffered']
    #allocation9 [shape = 's32[1]{0}', space=sflag, size = 0x4, scoped, tag = 'scoped memory for tpu_custom_call.1']
    #allocation10 [shape = 'u8[16384]{0}', space=vmem, size = 0x4000, scoped, tag = 'input window, operand 3, single buffered']
    #allocation11 [shape = 'u8[16384]{0}', space=vmem, size = 0x4000, scoped, tag = 'input window, operand 4, single buffered']
    #allocation12 [shape = 's32[1]{0}', space=sflag, size = 0x4, scoped, tag = 'scoped memory for tpu_custom_call.1']
    #allocation13 [shape = 'u8[16384]{0}', space=vmem, size = 0x4000, scoped, tag = 'input window, operand 5, single buffered']
    #allocation14 [shape = 'u8[32768]{0}', space=vmem, size = 0x8000, scoped, tag = 'output window, operand 0, single buffered']
    %11 = vsyncpa [#allocation5], 0
    %12 = vsyncpa [#allocation6], 0
    %13 = vsyncpa [#allocation9], 0
    %14 = vsyncpa [#allocation3], 0
    %15 = vsyncpa [#allocation12], 0
    %16 = vsyncpa [#allocation4], 0
    // Predicated region
    $region2: #{tpu_custom_call.1} parent=1 // pred_check
      _
    $region3: #{tpu_custom_call.1} parent=1 // pred_check_branch
      %18 = sbr.rel (0) target = $region5
    $region4: #{tpu_custom_call.1} parent=1 // pred_region
      %s20 = ssub.s32 16, 16
      %21 = vsyncadd [#allocation5], %s20
      %24 = dma.hbm_to_smem %s0, 16, [#allocation2], [#allocation5]
    $region5: #{tpu_custom_call.1} parent=1 // pred_fallthru
      _
    // Predicated region
    $region6: #{tpu_custom_call.1} parent=1 // pred_check
      _
    $region7: #{tpu_custom_call.1} parent=1 // pred_check_branch
      %26 = sbr.rel (0) target = $region9
    $region8: #{tpu_custom_call.1} parent=1 // pred_region
      %s28 = ssub.s32 16, 16
      %29 = vsyncadd [#allocation6], %s28
      %s31 = sshll.u32 %s1, 4
      %s32 = int_to_ptr.vmem [resolvable:$true] %s31
      %34 = dma.vmem_to_smem %s32, 16, [#allocation7], [#allocation6]
    $region9: #{tpu_custom_call.1} parent=1 // pred_fallthru
      _
    // Predicated region
    $region10: #{tpu_custom_call.1} parent=1 // pred_check
      _
    $region11: #{tpu_custom_call.1} parent=1 // pred_check_branch
      %36 = sbr.rel (0) target = $region13
    $region12: #{tpu_custom_call.1} parent=1 // pred_region
      %s38 = ssub.s32 16, 16
      %39 = vsyncadd [#allocation9], %s38
      %s41 = sshll.u32 %s2, 4
      %s42 = int_to_ptr.vmem [resolvable:$true] %s41
      %44 = dma.vmem_to_smem %s42, 16, [#allocation8], [#allocation9]
    $region13: #{tpu_custom_call.1} parent=1 // pred_fallthru
      _
    // Predicated region
    $region14: #{tpu_custom_call.1} parent=1 // pred_check
      _
    $region15: #{tpu_custom_call.1} parent=1 // pred_check_branch
      %46 = sbr.rel (0) target = $region17
    $region16: #{tpu_custom_call.1} parent=1 // pred_region
      %s48 = ssub.s32 512, 512
      %49 = vsyncadd [#allocation3], %s48
      %s51 = sshll.u32 [#allocation10], 4
      %s52 = int_to_ptr.vmem [resolvable:$true] %s51
      %54 = dma.hbm_to_vmem [thread:$0]  %s3, 512, %s52, [#allocation3]
    $region17: #{tpu_custom_call.1} parent=1 // pred_fallthru
      _
    // Predicated region
    $region18: #{tpu_custom_call.1} parent=1 // pred_check
      _
    $region19: #{tpu_custom_call.1} parent=1 // pred_check_branch
      %56 = sbr.rel (0) target = $region21
    $region20: #{tpu_custom_call.1} parent=1 // pred_region
      %s58 = ssub.s32 512, 512
      %59 = vsyncadd [#allocation12], %s58
      %s61 = sshll.u32 [#allocation11], 4
      %s62 = int_to_ptr.vmem [resolvable:$true] %s61
      %64 = dma.hbm_to_vmem [thread:$0]  %s4, 512, %s62, [#allocation12]
    $region21: #{tpu_custom_call.1} parent=1 // pred_fallthru
      _
    // Predicated region
    $region22: #{tpu_custom_call.1} parent=1 // pred_check
      _
    $region23: #{tpu_custom_call.1} parent=1 // pred_check_branch
      %66 = sbr.rel (0) target = $region25
    $region24: #{tpu_custom_call.1} parent=1 // pred_region
      %s68 = ssub.s32 512, 512
      %69 = vsyncadd [#allocation12], %s68
      %s71 = sshll.u32 [#allocation13], 4
      %s72 = int_to_ptr.vmem [resolvable:$true] %s71
      %74 = dma.hbm_to_vmem [thread:$0]  %s5, 512, %s72, [#allocation12]
    $region25: #{tpu_custom_call.1} parent=1 // pred_fallthru
      _
    // Predicated region
    $region26: #{tpu_custom_call.1} parent=1 // pred_check
      _
    $region27: #{tpu_custom_call.1} parent=1 // pred_check_branch
      %76 = sbr.rel (0) target = $region29
    $region28: #{tpu_custom_call.1} parent=1 // pred_region
      %77 = dma.done [#allocation5], 16
    $region29: #{tpu_custom_call.1} parent=1 // pred_fallthru
      _
    // Predicated region
    $region30: #{tpu_custom_call.1} parent=1 // pred_check
      _
    $region31: #{tpu_custom_call.1} parent=1 // pred_check_branch
      %79 = sbr.rel (0) target = $region33
    $region32: #{tpu_custom_call.1} parent=1 // pred_region
      %80 = dma.done [#allocation6], 16
    $region33: #{tpu_custom_call.1} parent=1 // pred_fallthru
      _
    // Predicated region
    $region34: #{tpu_custom_call.1} parent=1 // pred_check
      _
    $region35: #{tpu_custom_call.1} parent=1 // pred_check_branch
      %82 = sbr.rel (0) target = $region37
    $region36: #{tpu_custom_call.1} parent=1 // pred_region
      %83 = dma.done [#allocation9], 16
    $region37: #{tpu_custom_call.1} parent=1 // pred_fallthru
      _
    // Predicated region
    $region38: #{tpu_custom_call.1} parent=1 // pred_check
      _
    $region39: #{tpu_custom_call.1} parent=1 // pred_check_branch
      %85 = sbr.rel (0) target = $region41
    $region40: #{tpu_custom_call.1} parent=1 // pred_region
      %86 = dma.done [#allocation3], 512
    $region41: #{tpu_custom_call.1} parent=1 // pred_fallthru
      _
    // Predicated region
    $region42: #{tpu_custom_call.1} parent=1 // pred_check
      _
    $region43: #{tpu_custom_call.1} parent=1 // pred_check_branch
      %88 = sbr.rel (0) target = $region45
    $region44: #{tpu_custom_call.1} parent=1 // pred_region
      %89 = dma.done [#allocation12], 512
    $region45: #{tpu_custom_call.1} parent=1 // pred_fallthru
      _
    // Predicated region
    $region46: #{tpu_custom_call.1} parent=1 // pred_check
      _
    $region47: #{tpu_custom_call.1} parent=1 // pred_check_branch
      %91 = sbr.rel (0) target = $region49
    $region48: #{tpu_custom_call.1} parent=1 // pred_region
      %92 = dma.done [#allocation12], 512
    $region49: #{tpu_custom_call.1} parent=1 // pred_fallthru
      _
    %93 = sfence
    %v94 = vld [vmem:[#allocation10] sm:$0xff]
    %v95 = vld [vmem:[#allocation10 + $0x8] sm:$0xff]
    %v96 = vld [vmem:[#allocation10 + $0x10] sm:$0xff]
    %v97 = vld [vmem:[#allocation10 + $0x18] sm:$0xff]
    %v98 = vld [vmem:[#allocation11] sm:$0xff]
    %v99 = vld [vmem:[#allocation11 + $0x8] sm:$0xff]
    %v100 = vld [vmem:[#allocation11 + $0x10] sm:$0xff]
    %v101 = vld [vmem:[#allocation11 + $0x18] sm:$0xff]
    %v102 = vld [vmem:[#allocation13] sm:$0xff]
    %v103 = vld [vmem:[#allocation13 + $0x8] sm:$0xff]
    %v104 = vld [vmem:[#allocation13 + $0x10] sm:$0xff]
    %v105 = vld [vmem:[#allocation13 + $0x18] sm:$0xff]
    %s106 = sld [smem:[#allocation7]]
    %v107 = vstv %s106
    %v108 = vmul.f32 %v107, %v98
    %v109 = vmul.f32 %v107, %v99
    %v110 = vmul.f32 %v107, %v100
    %v111 = vmul.f32 %v107, %v101
    %s112 = sld [smem:[#allocation7 + $0x1]]
    %v113 = vstv %s112
    %v114 = vmul.f32 %v113, %v98
    %v115 = vmul.f32 %v113, %v99
    %v116 = vmul.f32 %v113, %v100
    %v117 = vmul.f32 %v113, %v101
    %s118 = sld [smem:[#allocation7 + $0x2]]
    %v119 = vstv %s118
    %v120 = vmul.f32 %v119, %v98
    %v121 = vmul.f32 %v119, %v99
    %v122 = vmul.f32 %v119, %v100
    %v123 = vmul.f32 %v119, %v101
    %s124 = sld [smem:[#allocation7 + $0x3]]
    %v125 = vstv %s124
    %v126 = vmul.f32 %v125, %v98
    %v127 = vmul.f32 %v125, %v99
    %v128 = vmul.f32 %v125, %v100
    %v129 = vmul.f32 %v125, %v101
    %s130 = sld [smem:[#allocation8]]
    %v131 = vstv %s130
    %v132 = vmul.f32 %v131, %v102
    %v133 = vmul.f32 %v131, %v103
    %v134 = vmul.f32 %v131, %v104
    %v135 = vmul.f32 %v131, %v105
    %s136 = sld [smem:[#allocation8 + $0x1]]
    %v137 = vstv %s136
    %v138 = vmul.f32 %v137, %v102
    %v139 = vmul.f32 %v137, %v103
    %v140 = vmul.f32 %v137, %v104
    %v141 = vmul.f32 %v137, %v105
    %v142 = vmul.f32 %v108, %v108
    %v143 = vmul.f32 %v109, %v109
    %v144 = vmul.f32 %v110, %v110
    %v145 = vmul.f32 %v111, %v111
    %v146 = vmul.f32 %v114, %v114
    %v147 = vmul.f32 %v115, %v115
    %v148 = vmul.f32 %v116, %v116
    %v149 = vmul.f32 %v117, %v117
    %v150 = vadd.f32 %v142, %v146
    %v151 = vadd.f32 %v143, %v147
    %v152 = vadd.f32 %v144, %v148
    %v153 = vadd.f32 %v145, %v149
    %v154 = vmul.f32 %v108, %v120
    %v155 = vmul.f32 %v109, %v121
    %v156 = vmul.f32 %v110, %v122
    %v157 = vmul.f32 %v111, %v123
    %v158 = vmul.f32 %v114, %v126
    %v159 = vmul.f32 %v115, %v127
    %v160 = vmul.f32 %v116, %v128
    %v161 = vmul.f32 %v117, %v129
    %v162 = vadd.f32 %v154, %v158
    %v163 = vadd.f32 %v155, %v159
    %v164 = vadd.f32 %v156, %v160
    %v165 = vadd.f32 %v157, %v161
    %v166 = vmul.f32 %v108, %v132
    %v167 = vmul.f32 %v109, %v133
    %v168 = vmul.f32 %v110, %v134
    %v169 = vmul.f32 %v111, %v135
    %v170 = vmul.f32 %v114, %v138
    %v171 = vmul.f32 %v115, %v139
    %v172 = vmul.f32 %v116, %v140
    %v173 = vmul.f32 %v117, %v141
    %v174 = vadd.f32 %v166, %v170
    %v175 = vadd.f32 %v167, %v171
    %v176 = vadd.f32 %v168, %v172
    %v177 = vadd.f32 %v169, %v173
    %s178 = sld [smem:[#allocation2]]
    %s179 = smul.f32 %s178, 10.0
    %v180 = vstv %s179
    %v181 = vmul.f32 %v180, %v94
    %v182 = vmul.f32 %v180, %v95
    %v183 = vmul.f32 %v180, %v96
    %v184 = vmul.f32 %v180, %v97
    %v185 = vsub.f32 %v181, %v174
    %v186 = vsub.f32 %v182, %v175
    %v187 = vsub.f32 %v183, %v176
    %v188 = vsub.f32 %v184, %v177
    %v189 = vmul.f32 %v120, %v120
    %v190 = vmul.f32 %v121, %v121
    %v191 = vmul.f32 %v122, %v122
    %v192 = vmul.f32 %v123, %v123
    %v193 = vmul.f32 %v126, %v126
    %v194 = vmul.f32 %v127, %v127
    %v195 = vmul.f32 %v128, %v128
    %v196 = vmul.f32 %v129, %v129
    %v197 = vadd.f32 %v189, %v193
    %v198 = vadd.f32 %v190, %v194
    %v199 = vadd.f32 %v191, %v195
    %v200 = vadd.f32 %v192, %v196
    %v201 = vmul.f32 %v120, %v132
    %v202 = vmul.f32 %v121, %v133
    %v203 = vmul.f32 %v122, %v134
    %v204 = vmul.f32 %v123, %v135
    %v205 = vmul.f32 %v126, %v138
    %v206 = vmul.f32 %v127, %v139
    %v207 = vmul.f32 %v128, %v140
    %v208 = vmul.f32 %v129, %v141
    %v209 = vadd.f32 %v201, %v205
    %v210 = vadd.f32 %v202, %v206
    %v211 = vadd.f32 %v203, %v207
    %v212 = vadd.f32 %v204, %v208
    %s213 = sld [smem:[#allocation2 + $0x1]]
    %s214 = smul.f32 %s213, 10.0
    %v215 = vstv %s214
    %v216 = vmul.f32 %v215, %v94
    %v217 = vmul.f32 %v215, %v95
    %v218 = vmul.f32 %v215, %v96
    %v219 = vmul.f32 %v215, %v97
    %v220 = vsub.f32 %v216, %v209
    %v221 = vsub.f32 %v217, %v210
    %v222 = vsub.f32 %v218, %v211
    %v223 = vsub.f32 %v219, %v212
    %v224 = vmul.f32 %v150, %v197
    %v225 = vmul.f32 %v151, %v198
    %v226 = vmul.f32 %v152, %v199
    %v227 = vmul.f32 %v153, %v200
    %v228 = vmul.f32 %v162, %v162
    %v229 = vmul.f32 %v163, %v163
    %v230 = vmul.f32 %v164, %v164
    %v231 = vmul.f32 %v165, %v165
    %v232 = vsub.f32 %v224, %v228
    %v233 = vsub.f32 %v225, %v229
    %v234 = vsub.f32 %v226, %v230
    %v235 = vsub.f32 %v227, %v231
    %v236 = vrcp.pop %v232
    %v237 = vrcp.pop %v233
    %v238 = vrcp.pop %v234
    %v239 = vrcp.pop %v235
    %v240 = vmul.f32 %v232, %v236
    %v241 = vmul.f32 %v233, %v237
    %v242 = vmul.f32 %v234, %v238
    %v243 = vmul.f32 %v235, %v239
    %v244 = vsub.f32 2.0, %v240
    %v245 = vsub.f32 2.0, %v241
    %v246 = vsub.f32 2.0, %v242
    %v247 = vsub.f32 2.0, %v243
    %v248 = vmul.f32 %v236, %v244
    %v249 = vmul.f32 %v237, %v245
    %v250 = vmul.f32 %v238, %v246
    %v251 = vmul.f32 %v239, %v247
    %v252 = vmul.f32 %v197, %v185
    %v253 = vmul.f32 %v198, %v186
    %v254 = vmul.f32 %v199, %v187
    %v255 = vmul.f32 %v200, %v188
    %v256 = vmul.f32 %v162, %v220
    %v257 = vmul.f32 %v163, %v221
    %v258 = vmul.f32 %v164, %v222
    %v259 = vmul.f32 %v165, %v223
    %v260 = vsub.f32 %v252, %v256
    %v261 = vsub.f32 %v253, %v257
    %v262 = vsub.f32 %v254, %v258
    %v263 = vsub.f32 %v255, %v259
    %v264 = vmul.f32 %v260, %v248
    %v265 = vmul.f32 %v261, %v249
    %v266 = vmul.f32 %v262, %v250
    %v267 = vmul.f32 %v263, %v251
    %268 = vst [vmem:[#allocation14] sm:$0xff] %v264
    %269 = vst [vmem:[#allocation14 + $0x8] sm:$0xff] %v265
    %270 = vst [vmem:[#allocation14 + $0x10] sm:$0xff] %v266
    %271 = vst [vmem:[#allocation14 + $0x18] sm:$0xff] %v267
    %v272 = vmul.f32 %v150, %v220
    %v273 = vmul.f32 %v151, %v221
    %v274 = vmul.f32 %v152, %v222
    %v275 = vmul.f32 %v153, %v223
    %v276 = vmul.f32 %v162, %v185
    %v277 = vmul.f32 %v163, %v186
    %v278 = vmul.f32 %v164, %v187
    %v279 = vmul.f32 %v165, %v188
    %v280 = vsub.f32 %v272, %v276
    %v281 = vsub.f32 %v273, %v277
    %v282 = vsub.f32 %v274, %v278
    %v283 = vsub.f32 %v275, %v279
    %v284 = vmul.f32 %v280, %v248
    %v285 = vmul.f32 %v281, %v249
    %v286 = vmul.f32 %v282, %v250
    %v287 = vmul.f32 %v283, %v251
    %s288 = scalar_lea.vmem [#allocation14], 32
    %289 = vst [vmem:[%s288] sm:$0xff] %v284
    %290 = vst [vmem:[%s288 + $0x8] sm:$0xff] %v285
    %291 = vst [vmem:[%s288 + $0x10] sm:$0xff] %v286
    %292 = vst [vmem:[%s288 + $0x18] sm:$0xff] %v287
    // Predicated region
    $region50: #{tpu_custom_call.1} parent=1 // pred_check
      _
    $region51: #{tpu_custom_call.1} parent=1 // pred_check_branch
      %294 = sbr.rel (0) target = $region53
    $region52: #{tpu_custom_call.1} parent=1 // pred_region
      %s296 = ssub.s32 1024, 1024
      %297 = vsyncadd [#allocation4], %s296
      %s298 = sshll.u32 [#allocation14], 4
      %s299 = int_to_ptr.vmem [resolvable:$true] %s298
      %304 = dma.vmem_to_hbm [thread:$0]  %s299, 1024, %s6, [#allocation4], 512, 512, 32
    $region53: #{tpu_custom_call.1} parent=1 // pred_fallthru
      _
    // Predicated region
    $region54: #{tpu_custom_call.1} parent=1 // pred_check
      _
    $region55: #{tpu_custom_call.1} parent=1 // pred_check_branch
      %306 = sbr.rel (0) target = $region57
    $region56: #{tpu_custom_call.1} parent=1 // pred_region
      %307 = dma.done [#allocation4], 1024
    $region57: #{tpu_custom_call.1} parent=1 // pred_fallthru
      _
    %308 = vsyncpa [#allocation3], 1
    %309 = vsyncpa [#allocation12], 1
    %310 = vsyncpa [#allocation4], 1
    %311 = vsyncpa [#allocation5], 1
    %312 = vsyncpa [#allocation6], 1
    %313 = vsyncpa [#allocation9], 1

</llo_original>
